<compile_context>
chip_gen: v5e
topology: v5e:2x2
jax: 0.10.0
libtpu: 0.0.40
codegen_flags: <defaults>
</compile_context>

<pallas_src>
from functools import partial

import jax
import jax.numpy as jnp
from jax.experimental import pallas as pl
from jax.experimental.pallas import tpu as pltpu


# ---------------------------------------------------------------------------
# Fused Gibbs-sweep kernel.  Grid = (batch_tile,).  All rounds/axes are an
# in-kernel fori_loop over step = r * D + i.
# Inputs (VMEM blocks, all DMA'd once per batch tile):
#   base0  : (BT, K*H) f32   initial lane-tiled pre-activation onehot(x0) @ W1
#   x0     : (D, BT, K) f32  initial per-axis one-hot blocks
#   u      : (T, BT, 1) f32  all uniforms (T = num_rounds * D), resident
#   w1t    : (D, K, K*H) f32 axis-d W1 rows, lane-tiled K times
#   w1fb   : (D, 1, K*H) f32 axis-d W1 rows flattened (candidate k at cols
#                            k*H:(k+1)*H) with b1 folded in
#   w2blk  : (K*H, K) f32    block-diagonal second layer (kron(eye(K), w2^T))
#   tri    : (K, K) f32      upper-triangular ones (CDF matmul)
# Output:
#   out    : (BT, D) i32     sampled categories (assembled once after the loop)
# Scratch:
#   base   : (BT, K*H) f32   running lane-tiled pre-activation
#   xs     : (D, BT, K) f32  running per-axis one-hot state
# ---------------------------------------------------------------------------
def _gibbs_sweep_kernel(base0_ref, x0_ref, u_ref, w1t_ref, w1fb_ref,
                        w2blk_ref, tri_ref, out_ref, base_ref, xs_ref):
    B, _ = base_ref.shape
    K = xs_ref.shape[-1]
    D = out_ref.shape[-1]
    T = u_ref.shape[0]

    # Initialize the resident state (runs once: grid has only the batch axis).
    base_ref[...] = base0_ref[...]
    xs_ref[...] = x0_ref[...]

    # Hoisted out of the loop (JAX does not CSE broadcasts).
    kiota = jax.lax.broadcasted_iota(jnp.int32, (B, K), 1)

    def step_body(step, carry):
        i = step % D                   # axis being resampled this step

        old = xs_ref[i]                # (B, K)   current one-hot of axis i
        w1t_i = w1t_ref[i]             # (K, K*H) lane-tiled W1 rows of axis i
        w1row = w1fb_ref[i]            # (1, K*H) candidate rows, b1 folded in

        # Remove the current axis-i contribution from the running
        # pre-activation, then form candidate hidden activations lane-dense:
        # column k*H+h is candidate k, hidden unit h  (== torch's repeat(K,1)).
        base_minus = base_ref[...] - jnp.dot(
            old, w1t_i, preferred_element_type=jnp.float32)
        hmat = jnp.maximum(base_minus + w1row, 0.0)                  # (B, K*H)

        # Per-candidate scores with one MXU matmul against block-diagonal w2.
        s = jnp.dot(hmat, w2blk_ref[...],
                    preferred_element_type=jnp.float32)              # (B, K)

        # softmax over K candidates + torch.multinomial(prob, 1) via inverse
        # CDF with one uniform.  Divide avoided by comparing u * sum(e) to the
        # unnormalized CDF; sum(e) is the last column of the CDF matmul.
        m = jnp.max(s, axis=-1, keepdims=True)
        e = jnp.exp(s - m)                                           # (B, K)
        cdf = jnp.dot(e, tri_ref[...],
                      preferred_element_type=jnp.float32)            # (B, K)
        denom = cdf[:, K - 1:K]                                      # == sum(e)
        u = u_ref[step]                                              # (B, 1)
        # Ties (u*denom == cdf boundary) fall to the next category + clamp:
        # differs from torch.multinomial only on measure-zero FP ties.
        idx = jnp.sum((u * denom >= cdf).astype(jnp.int32),
                      axis=-1, keepdims=True)
        idx = jnp.minimum(idx, K - 1)                                # (B, 1)

        new_onehot = (kiota == idx).astype(jnp.float32)              # (B, K)

        # Add back the freshly sampled axis-i contribution; persist state.
        base_ref[...] = base_minus + jnp.dot(
            new_onehot, w1t_i, preferred_element_type=jnp.float32)
        xs_ref[i] = new_onehot
        return carry

    jax.lax.fori_loop(0, T, step_body, 0)

    # Assemble the (B, D) int32 output ONCE from the resident one-hot state
    # (unvisited axes keep their init values by construction).
    diota = jax.lax.broadcasted_iota(jnp.int32, (B, D), 1)
    out = jnp.zeros((B, D), jnp.int32)
    for i in range(D):                                               # D static
        col = jnp.sum(jnp.where(xs_ref[i] > 0.5, kiota, 0),
                      axis=-1, keepdims=True)                        # (B, 1)
        out = jnp.where(diota == i, col, out)
    out_ref[...] = out


@partial(jax.jit, static_argnames=("num_rounds", "n_choices"))
def gibbs_sweep(init_samples, score_params, key, *, num_rounds, n_choices):
    """Run `num_rounds` full Gibbs sweeps over all discrete dims."""
    W1, b1, w2, b2 = score_params   # b2 is a constant shift -> cancels in softmax
    del b2
    B, D = init_samples.shape
    K = n_choices
    H = W1.shape[1]
    KH = K * H
    T = num_rounds * D

    if num_rounds == 0:
        return init_samples.astype(jnp.int32)

    # ---- one-time precomputation (hoisted out of the fused sweep) ----------
    x0 = jax.nn.one_hot(init_samples, K, dtype=jnp.float32)          # (B, D, K)
    base0 = jnp.dot(x0.reshape(B, D * K), W1)                        # (B, H), ONCE
    base0t = jnp.tile(base0, (1, K))                                 # (B, K*H)
    x0_blocks = jnp.transpose(x0, (1, 0, 2))                         # (D, B, K)

    w1t = jnp.tile(W1.reshape(D, K, H), (1, 1, K))                   # (D, K, K*H)
    b1k = jnp.tile(b1.reshape(1, H), (1, K))                         # (1, K*H)
    w1fb = W1.reshape(D, 1, KH) + b1k.reshape(1, 1, KH)              # b1 folded in
    w2blk = jnp.kron(jnp.eye(K, dtype=jnp.float32),
                     w2.reshape(H, 1)).astype(jnp.float32)           # (K*H, K)
    tri = jnp.triu(jnp.ones((K, K), dtype=jnp.float32))              # (K, K)

    # All per-step uniforms generated up front (one RNG op total) and made
    # resident in VMEM (one DMA total).
    u = jax.random.uniform(key, (T, B, 1), dtype=jnp.float32)

    BT = B                      # single batch tile at toy sizes; for real
    grid = (B // BT,)           # num_samples use BT=128-256 (>=2 tiles -> v7x)

    out = pl.pallas_call(
        _gibbs_sweep_kernel,
        out_shape=jax.ShapeDtypeStruct((B, D), jnp.int32),
        grid=grid,
        in_specs=[
            pl.BlockSpec((BT, KH),   lambda bt: (bt, 0)),            # base0t
            pl.BlockSpec((D, BT, K), lambda bt: (0, bt, 0)),         # x0
            pl.BlockSpec((T, BT, 1), lambda bt: (0, bt, 0)),         # u (resident)
            pl.BlockSpec((D, K, KH), lambda bt: (0, 0, 0)),          # w1t
            pl.BlockSpec((D, 1, KH), lambda bt: (0, 0, 0)),          # w1fb
            pl.BlockSpec((KH, K),    lambda bt: (0, 0)),             # w2blk
            pl.BlockSpec((K, K),     lambda bt: (0, 0)),             # tri
        ],
        out_specs=pl.BlockSpec((BT, D), lambda bt: (bt, 0)),
        scratch_shapes=[
            pltpu.VMEM((BT, KH), jnp.float32),    # running pre-activation
            pltpu.VMEM((D, BT, K), jnp.float32),  # running one-hot state
        ],
        compiler_params=pltpu.CompilerParams(
            dimension_semantics=("parallel",)),
    )(base0t, x0_blocks, u, w1t, w1fb, w2blk, tri)
    return out


class GibbsSampler:
    """JAX/Pallas port of aloe.common.sampler.GibbsSampler."""

    def __init__(self, n_choices, discrete_dim):
        self.n_choices = n_choices
        self.discrete_dim = discrete_dim

    def forward(self, score_params, num_rounds, key,
                num_samples=None, init_samples=None):
        assert num_samples is not None or init_samples is not None
        if init_samples is None:
            key, sub = jax.random.split(key)
            # torch uses int64; JAX uses int32 here.
            init_samples = jax.random.randint(
                sub, (num_samples, self.discrete_dim), 0, self.n_choices,
                dtype=jnp.int32)
        key, sub = jax.random.split(key)
        return gibbs_sweep(init_samples, score_params, sub,
                           num_rounds=num_rounds, n_choices=self.n_choices)


if __name__ == "__main__":
    # small, TPU-friendly sizes (K*H = 128 -> exactly one lane tile)
    B = 8            # num_samples
    D = 8            # discrete_dim
    K = 4            # n_choices
    H = 32           # score-MLP hidden width
    NUM_ROUNDS = 2

    key = jax.random.PRNGKey(0)
    kw1, kb1, kw2, kb2, krun = jax.random.split(key, 5)

    # deterministic synthetic score-function parameters
    W1 = 0.1 * jax.random.normal(kw1, (D * K, H), dtype=jnp.float32)
    b1 = 0.1 * jax.random.normal(kb1, (1, H), dtype=jnp.float32)
    w2 = 0.1 * jax.random.normal(kw2, (1, H), dtype=jnp.float32)   # (H,) as (1,H)
    b2 = 0.1 * jax.random.normal(kb2, (1, 1), dtype=jnp.float32)
    score_params = (W1, b1, w2, b2)

    sampler = GibbsSampler(n_choices=K, discrete_dim=D)
    out = sampler.forward(score_params, NUM_ROUNDS, krun, num_samples=B)
    out = jax.block_until_ready(out)

    assert out.shape == (B, D)
    assert out.dtype == jnp.int32
    assert bool(jnp.all((out >= 0) & (out < K)))
    print("KERNEL_OK")
</pallas_src>

<mosaic_0001>
module attributes {stable_mosaic.version = 11 : i64} {
  func.func @_gibbs_sweep_kernel(%arg0: i32, %arg1: memref<8x128xf32, #tpu.memory_space<vmem>>, %arg2: memref<8x8x4xf32, #tpu.memory_space<vmem>>, %arg3: memref<16x8x1xf32, #tpu.memory_space<vmem>>, %arg4: memref<8x4x128xf32, #tpu.memory_space<vmem>>, %arg5: memref<8x1x128xf32, #tpu.memory_space<vmem>>, %arg6: memref<128x4xf32, #tpu.memory_space<vmem>>, %arg7: memref<4x4xf32, #tpu.memory_space<vmem>>, %arg8: memref<8x8xi32, #tpu.memory_space<vmem>>, %arg9: memref<8x128xf32, #tpu.memory_space<vmem>>, %arg10: memref<8x8x4xf32, #tpu.memory_space<vmem>>) attributes {dimension_semantics = [#tpu.dimension_semantics<parallel>], iteration_bounds = array<i64: 1>, scalar_prefetch = 0 : i64, scratch_operands = 2 : i64, tpu.core_type = #tpu.core_type<tc>, window_params = [{transform_indices = @transform_0, window_bounds = array<i64: 8, 128>}, {transform_indices = @transform_1, window_bounds = array<i64: 8, 8, 4>}, {transform_indices = @transform_2, window_bounds = array<i64: 16, 8, 1>}, {pipeline_mode = #tpu.pipeline_mode<synchronous>, transform_indices = @transform_3, window_bounds = array<i64: 8, 4, 128>}, {pipeline_mode = #tpu.pipeline_mode<synchronous>, transform_indices = @transform_4, window_bounds = array<i64: 8, 1, 128>}, {pipeline_mode = #tpu.pipeline_mode<synchronous>, transform_indices = @transform_5, window_bounds = array<i64: 128, 4>}, {pipeline_mode = #tpu.pipeline_mode<synchronous>, transform_indices = @transform_6, window_bounds = array<i64: 4, 4>}, {transform_indices = @transform_7, window_bounds = array<i64: 8, 8>}]} {
    %c0 = arith.constant 0 : index
    %c0_0 = arith.constant 0 : index
    %0 = vector.load %arg1[%c0, %c0_0] : memref<8x128xf32, #tpu.memory_space<vmem>>, vector<8x128xf32>
    %c0_1 = arith.constant 0 : index
    %c0_2 = arith.constant 0 : index
    %1 = vector.load %arg9[%c0_1, %c0_2] : memref<8x128xf32, #tpu.memory_space<vmem>>, vector<8x128xf32>
    tpu.vector_store %arg9[%c0_1, %c0_2], %0 {strides = array<i32>} : memref<8x128xf32, #tpu.memory_space<vmem>>, vector<8x128xf32>,
    %c0_3 = arith.constant 0 : index
    %c0_4 = arith.constant 0 : index
    %c0_5 = arith.constant 0 : index
    %2 = vector.load %arg2[%c0_3, %c0_4, %c0_5] : memref<8x8x4xf32, #tpu.memory_space<vmem>>, vector<8x8x4xf32>
    %c0_6 = arith.constant 0 : index
    %c0_7 = arith.constant 0 : index
    %c0_8 = arith.constant 0 : index
    %3 = vector.load %arg10[%c0_6, %c0_7, %c0_8] : memref<8x8x4xf32, #tpu.memory_space<vmem>>, vector<8x8x4xf32>
    tpu.vector_store %arg10[%c0_6, %c0_7, %c0_8], %2 {strides = array<i32>} : memref<8x8x4xf32, #tpu.memory_space<vmem>>, vector<8x8x4xf32>,
    %4 = tpu.iota {dimensions = array<i32: 1>} : vector<8x4xi32>
    %c0_i32 = arith.constant 0 : i32
    %c16_i32 = arith.constant 16 : i32
    %5 = arith.addi %c0_i32, %c16_i32 : i32
    %c1_i32 = arith.constant 1 : i32
    scf.for %arg11 = %c0_i32 to %5 step %c1_i32  : i32 {
      %c8_i32 = arith.constant 8 : i32
      %c0_i32_55 = arith.constant 0 : i32
      %113 = arith.cmpi eq, %c8_i32, %c0_i32_55 : i32
      %c1_i32_56 = arith.constant 1 : i32
      %114 = arith.select %113, %c1_i32_56, %c8_i32 : i32
      %115 = arith.remsi %arg11, %114 : i32
      %c0_i32_57 = arith.constant 0 : i32
      %116 = arith.cmpi ne, %115, %c0_i32_57 : i32
      %c0_i32_58 = arith.constant 0 : i32
      %117 = arith.cmpi slt, %115, %c0_i32_58 : i32
      %c0_i32_59 = arith.constant 0 : i32
      %118 = arith.cmpi slt, %114, %c0_i32_59 : i32
      %119 = arith.xori %117, %118 : i1
      %120 = arith.andi %119, %116 : i1
      %121 = arith.addi %115, %114 : i32
      %122 = arith.select %120, %121, %115 : i32
      %123 = arith.index_cast %122 : i32 to index
      %c0_60 = arith.constant 0 : index
      %c0_61 = arith.constant 0 : index
      %124 = vector.load %arg10[%123, %c0_60, %c0_61] : memref<8x8x4xf32, #tpu.memory_space<vmem>>, vector<1x8x4xf32>
      %125 = vector.shape_cast %124 : vector<1x8x4xf32> to vector<8x4xf32>
      %126 = arith.index_cast %122 : i32 to index
      %c0_62 = arith.constant 0 : index
      %c0_63 = arith.constant 0 : index
      %127 = vector.load %arg4[%126, %c0_62, %c0_63] : memref<8x4x128xf32, #tpu.memory_space<vmem>>, vector<1x4x128xf32>
      %128 = vector.shape_cast %127 : vector<1x4x128xf32> to vector<4x128xf32>
      %129 = arith.index_cast %122 : i32 to index
      %c0_64 = arith.constant 0 : index
      %c0_65 = arith.constant 0 : index
      %130 = vector.load %arg5[%129, %c0_64, %c0_65] : memref<8x1x128xf32, #tpu.memory_space<vmem>>, vector<1x1x128xf32>
      %131 = vector.shape_cast %130 : vector<1x1x128xf32> to vector<1x128xf32>
      %c0_66 = arith.constant 0 : index
      %c0_67 = arith.constant 0 : index
      %132 = vector.load %arg9[%c0_66, %c0_67] : memref<8x128xf32, #tpu.memory_space<vmem>>, vector<8x128xf32>
      %cst_68 = arith.constant dense<0.000000e+00> : vector<8x128xf32>
      %133 = tpu.matmul %125, %128, %cst_68 {dimension_numbers = #tpu.dot_dimension_numbers<[1], [0], [0], [1], [0, 0, 1, 1], [], []>} : vector<8x4xf32>, vector<4x128xf32>, vector<8x128xf32> -> vector<8x128xf32>
      %134 = arith.subf %132, %133 : vector<8x128xf32>
      %135 = vector.broadcast %131 : vector<1x128xf32> to vector<8x128xf32>
      %136 = arith.addf %134, %135 : vector<8x128xf32>
      %cst_69 = arith.constant 0.000000e+00 : f32
      %137 = vector.broadcast %cst_69 : f32 to vector<8x128xf32>
      %138 = arith.maximumf %136, %137 : vector<8x128xf32>
      %c0_70 = arith.constant 0 : index
      %c0_71 = arith.constant 0 : index
      %139 = vector.load %arg6[%c0_70, %c0_71] : memref<128x4xf32, #tpu.memory_space<vmem>>, vector<128x4xf32>
      %cst_72 = arith.constant dense<0.000000e+00> : vector<8x4xf32>
      %140 = tpu.matmul %138, %139, %cst_72 {dimension_numbers = #tpu.dot_dimension_numbers<[1], [0], [0], [1], [0, 0, 1, 1], [], []>} : vector<8x128xf32>, vector<128x4xf32>, vector<8x4xf32> -> vector<8x4xf32>
      %cst_73 = arith.constant dense<0xFF800000> : vector<8xf32>
      %141 = vector.multi_reduction <maximumf>, %140, %cst_73 [1] : vector<8x4xf32> to vector<8xf32>
      %142 = vector.shape_cast %141 : vector<8xf32> to vector<8x1xf32>
      %143 = vector.broadcast %142 : vector<8x1xf32> to vector<8x4xf32>
      %144 = arith.subf %140, %143 : vector<8x4xf32>
      %145 = math.exp %144 : vector<8x4xf32>
      %c0_74 = arith.constant 0 : index
      %c0_75 = arith.constant 0 : index
      %146 = vector.load %arg7[%c0_74, %c0_75] : memref<4x4xf32, #tpu.memory_space<vmem>>, vector<4x4xf32>
      %cst_76 = arith.constant dense<0.000000e+00> : vector<8x4xf32>
      %147 = tpu.matmul %145, %146, %cst_76 {dimension_numbers = #tpu.dot_dimension_numbers<[1], [0], [0], [1], [0, 0, 1, 1], [], []>} : vector<8x4xf32>, vector<4x4xf32>, vector<8x4xf32> -> vector<8x4xf32>
      %148 = vector.extract_strided_slice %147 {offsets = [0, 3], sizes = [8, 1], strides = [1, 1]} : vector<8x4xf32> to vector<8x1xf32>
      %149 = arith.index_cast %arg11 : i32 to index
      %c0_77 = arith.constant 0 : index
      %c0_78 = arith.constant 0 : index
      %150 = vector.load %arg3[%149, %c0_77, %c0_78] : memref<16x8x1xf32, #tpu.memory_space<vmem>>, vector<1x8x1xf32>
      %151 = vector.shape_cast %150 : vector<1x8x1xf32> to vector<8x1xf32>
      %152 = arith.mulf %151, %148 : vector<8x1xf32>
      %153 = vector.broadcast %152 : vector<8x1xf32> to vector<8x4xf32>
      %154 = arith.cmpf oge, %153, %147 : vector<8x4xf32>
      %155 = arith.extui %154 : vector<8x4xi1> to vector<8x4xi32>
      %cst_79 = arith.constant dense<0> : vector<8xi32>
      %156 = vector.multi_reduction <add>, %155, %cst_79 [1] : vector<8x4xi32> to vector<8xi32>
      %157 = vector.shape_cast %156 : vector<8xi32> to vector<8x1xi32>
      %c3_i32_80 = arith.constant 3 : i32
      %158 = vector.broadcast %c3_i32_80 : i32 to vector<8x1xi32>
      %159 = arith.minsi %157, %158 : vector<8x1xi32>
      %160 = vector.broadcast %159 : vector<8x1xi32> to vector<8x4xi32>
      %161 = arith.cmpi eq, %4, %160 : vector<8x4xi32>
      %162 = arith.extui %161 : vector<8x4xi1> to vector<8x4xi32>
      %163 = arith.sitofp %162 : vector<8x4xi32> to vector<8x4xf32>
      %cst_81 = arith.constant dense<0.000000e+00> : vector<8x128xf32>
      %164 = tpu.matmul %163, %128, %cst_81 {dimension_numbers = #tpu.dot_dimension_numbers<[1], [0], [0], [1], [0, 0, 1, 1], [], []>} : vector<8x4xf32>, vector<4x128xf32>, vector<8x128xf32> -> vector<8x128xf32>
      %165 = arith.addf %134, %164 : vector<8x128xf32>
      %c0_82 = arith.constant 0 : index
      %c0_83 = arith.constant 0 : index
      %166 = vector.load %arg9[%c0_82, %c0_83] : memref<8x128xf32, #tpu.memory_space<vmem>>, vector<8x128xf32>
      tpu.vector_store %arg9[%c0_82, %c0_83], %165 {strides = array<i32>} : memref<8x128xf32, #tpu.memory_space<vmem>>, vector<8x128xf32>,
      %167 = arith.index_cast %122 : i32 to index
      %c0_84 = arith.constant 0 : index
      %c0_85 = arith.constant 0 : index
      %168 = vector.load %arg10[%167, %c0_84, %c0_85] : memref<8x8x4xf32, #tpu.memory_space<vmem>>, vector<1x8x4xf32>
      %169 = vector.shape_cast %168 : vector<1x8x4xf32> to vector<8x4xf32>
      %170 = vector.shape_cast %163 : vector<8x4xf32> to vector<1x8x4xf32>
      tpu.vector_store %arg10[%167, %c0_84, %c0_85], %170 {strides = array<i32>} : memref<8x8x4xf32, #tpu.memory_space<vmem>>, vector<1x8x4xf32>,
    }
    %c16_i32_9 = arith.constant 16 : i32
    %6 = tpu.iota {dimensions = array<i32: 1>} : vector<8x8xi32>
    %c0_i32_10 = arith.constant 0 : i32
    %7 = vector.broadcast %c0_i32_10 : i32 to vector<8x8xi32>
    %c0_11 = arith.constant 0 : index
    %c0_12 = arith.constant 0 : index
    %c0_13 = arith.constant 0 : index
    %8 = vector.load %arg10[%c0_11, %c0_12, %c0_13] : memref<8x8x4xf32, #tpu.memory_space<vmem>>, vector<1x8x4xf32>
    %9 = vector.shape_cast %8 : vector<1x8x4xf32> to vector<8x4xf32>
    %cst = arith.constant 5.000000e-01 : f32
    %10 = vector.broadcast %cst : f32 to vector<8x4xf32>
    %11 = arith.cmpf ogt, %9, %10 : vector<8x4xf32>
    %c0_i32_14 = arith.constant 0 : i32
    %12 = vector.broadcast %c0_i32_14 : i32 to vector<8x4xi32>
    %13 = arith.select %11, %4, %12 : vector<8x4xi1>, vector<8x4xi32>
    %cst_15 = arith.constant dense<0> : vector<8xi32>
    %14 = vector.multi_reduction <add>, %13, %cst_15 [1] : vector<8x4xi32> to vector<8xi32>
    %15 = vector.shape_cast %14 : vector<8xi32> to vector<8x1xi32>
    %c0_i32_16 = arith.constant 0 : i32
    %16 = vector.broadcast %c0_i32_16 : i32 to vector<8x8xi32>
    %17 = arith.cmpi eq, %6, %16 : vector<8x8xi32>
    %18 = vector.shape_cast %15 : vector<8x1xi32> to vector<8x1xi32>
    %19 = vector.broadcast %18 : vector<8x1xi32> to vector<8x8xi32>
    %20 = arith.select %17, %19, %7 : vector<8x8xi1>, vector<8x8xi32>
    %c1 = arith.constant 1 : index
    %c0_17 = arith.constant 0 : index
    %c0_18 = arith.constant 0 : index
    %21 = vector.load %arg10[%c1, %c0_17, %c0_18] : memref<8x8x4xf32, #tpu.memory_space<vmem>>, vector<1x8x4xf32>
    %22 = vector.shape_cast %21 : vector<1x8x4xf32> to vector<8x4xf32>
    %cst_19 = arith.constant 5.000000e-01 : f32
    %23 = vector.broadcast %cst_19 : f32 to vector<8x4xf32>
    %24 = arith.cmpf ogt, %22, %23 : vector<8x4xf32>
    %c0_i32_20 = arith.constant 0 : i32
    %25 = vector.broadcast %c0_i32_20 : i32 to vector<8x4xi32>
    %26 = arith.select %24, %4, %25 : vector<8x4xi1>, vector<8x4xi32>
    %cst_21 = arith.constant dense<0> : vector<8xi32>
    %27 = vector.multi_reduction <add>, %26, %cst_21 [1] : vector<8x4xi32> to vector<8xi32>
    %28 = vector.shape_cast %27 : vector<8xi32> to vector<8x1xi32>
    %c1_i32_22 = arith.constant 1 : i32
    %29 = vector.broadcast %c1_i32_22 : i32 to vector<8x8xi32>
    %30 = arith.cmpi eq, %6, %29 : vector<8x8xi32>
    %31 = vector.shape_cast %28 : vector<8x1xi32> to vector<8x1xi32>
    %32 = vector.broadcast %31 : vector<8x1xi32> to vector<8x8xi32>
    %33 = arith.select %30, %32, %20 : vector<8x8xi1>, vector<8x8xi32>
    %c2 = arith.constant 2 : index
    %c0_23 = arith.constant 0 : index
    %c0_24 = arith.constant 0 : index
    %34 = vector.load %arg10[%c2, %c0_23, %c0_24] : memref<8x8x4xf32, #tpu.memory_space<vmem>>, vector<1x8x4xf32>
    %35 = vector.shape_cast %34 : vector<1x8x4xf32> to vector<8x4xf32>
    %cst_25 = arith.constant 5.000000e-01 : f32
    %36 = vector.broadcast %cst_25 : f32 to vector<8x4xf32>
    %37 = arith.cmpf ogt, %35, %36 : vector<8x4xf32>
    %c0_i32_26 = arith.constant 0 : i32
    %38 = vector.broadcast %c0_i32_26 : i32 to vector<8x4xi32>
    %39 = arith.select %37, %4, %38 : vector<8x4xi1>, vector<8x4xi32>
    %cst_27 = arith.constant dense<0> : vector<8xi32>
    %40 = vector.multi_reduction <add>, %39, %cst_27 [1] : vector<8x4xi32> to vector<8xi32>
    %41 = vector.shape_cast %40 : vector<8xi32> to vector<8x1xi32>
    %c2_i32 = arith.constant 2 : i32
    %42 = vector.broadcast %c2_i32 : i32 to vector<8x8xi32>
    %43 = arith.cmpi eq, %6, %42 : vector<8x8xi32>
    %44 = vector.shape_cast %41 : vector<8x1xi32> to vector<8x1xi32>
    %45 = vector.broadcast %44 : vector<8x1xi32> to vector<8x8xi32>
    %46 = arith.select %43, %45, %33 : vector<8x8xi1>, vector<8x8xi32>
    %c3 = arith.constant 3 : index
    %c0_28 = arith.constant 0 : index
    %c0_29 = arith.constant 0 : index
    %47 = vector.load %arg10[%c3, %c0_28, %c0_29] : memref<8x8x4xf32, #tpu.memory_space<vmem>>, vector<1x8x4xf32>
    %48 = vector.shape_cast %47 : vector<1x8x4xf32> to vector<8x4xf32>
    %cst_30 = arith.constant 5.000000e-01 : f32
    %49 = vector.broadcast %cst_30 : f32 to vector<8x4xf32>
    %50 = arith.cmpf ogt, %48, %49 : vector<8x4xf32>
    %c0_i32_31 = arith.constant 0 : i32
    %51 = vector.broadcast %c0_i32_31 : i32 to vector<8x4xi32>
    %52 = arith.select %50, %4, %51 : vector<8x4xi1>, vector<8x4xi32>
    %cst_32 = arith.constant dense<0> : vector<8xi32>
    %53 = vector.multi_reduction <add>, %52, %cst_32 [1] : vector<8x4xi32> to vector<8xi32>
    %54 = vector.shape_cast %53 : vector<8xi32> to vector<8x1xi32>
    %c3_i32 = arith.constant 3 : i32
    %55 = vector.broadcast %c3_i32 : i32 to vector<8x8xi32>
    %56 = arith.cmpi eq, %6, %55 : vector<8x8xi32>
    %57 = vector.shape_cast %54 : vector<8x1xi32> to vector<8x1xi32>
    %58 = vector.broadcast %57 : vector<8x1xi32> to vector<8x8xi32>
    %59 = arith.select %56, %58, %46 : vector<8x8xi1>, vector<8x8xi32>
    %c4 = arith.constant 4 : index
    %c0_33 = arith.constant 0 : index
    %c0_34 = arith.constant 0 : index
    %60 = vector.load %arg10[%c4, %c0_33, %c0_34] : memref<8x8x4xf32, #tpu.memory_space<vmem>>, vector<1x8x4xf32>
    %61 = vector.shape_cast %60 : vector<1x8x4xf32> to vector<8x4xf32>
    %cst_35 = arith.constant 5.000000e-01 : f32
    %62 = vector.broadcast %cst_35 : f32 to vector<8x4xf32>
    %63 = arith.cmpf ogt, %61, %62 : vector<8x4xf32>
    %c0_i32_36 = arith.constant 0 : i32
    %64 = vector.broadcast %c0_i32_36 : i32 to vector<8x4xi32>
    %65 = arith.select %63, %4, %64 : vector<8x4xi1>, vector<8x4xi32>
    %cst_37 = arith.constant dense<0> : vector<8xi32>
    %66 = vector.multi_reduction <add>, %65, %cst_37 [1] : vector<8x4xi32> to vector<8xi32>
    %67 = vector.shape_cast %66 : vector<8xi32> to vector<8x1xi32>
    %c4_i32 = arith.constant 4 : i32
    %68 = vector.broadcast %c4_i32 : i32 to vector<8x8xi32>
    %69 = arith.cmpi eq, %6, %68 : vector<8x8xi32>
    %70 = vector.shape_cast %67 : vector<8x1xi32> to vector<8x1xi32>
    %71 = vector.broadcast %70 : vector<8x1xi32> to vector<8x8xi32>
    %72 = arith.select %69, %71, %59 : vector<8x8xi1>, vector<8x8xi32>
    %c5 = arith.constant 5 : index
    %c0_38 = arith.constant 0 : index
    %c0_39 = arith.constant 0 : index
    %73 = vector.load %arg10[%c5, %c0_38, %c0_39] : memref<8x8x4xf32, #tpu.memory_space<vmem>>, vector<1x8x4xf32>
    %74 = vector.shape_cast %73 : vector<1x8x4xf32> to vector<8x4xf32>
    %cst_40 = arith.constant 5.000000e-01 : f32
    %75 = vector.broadcast %cst_40 : f32 to vector<8x4xf32>
    %76 = arith.cmpf ogt, %74, %75 : vector<8x4xf32>
    %c0_i32_41 = arith.constant 0 : i32
    %77 = vector.broadcast %c0_i32_41 : i32 to vector<8x4xi32>
    %78 = arith.select %76, %4, %77 : vector<8x4xi1>, vector<8x4xi32>
    %cst_42 = arith.constant dense<0> : vector<8xi32>
    %79 = vector.multi_reduction <add>, %78, %cst_42 [1] : vector<8x4xi32> to vector<8xi32>
    %80 = vector.shape_cast %79 : vector<8xi32> to vector<8x1xi32>
    %c5_i32 = arith.constant 5 : i32
    %81 = vector.broadcast %c5_i32 : i32 to vector<8x8xi32>
    %82 = arith.cmpi eq, %6, %81 : vector<8x8xi32>
    %83 = vector.shape_cast %80 : vector<8x1xi32> to vector<8x1xi32>
    %84 = vector.broadcast %83 : vector<8x1xi32> to vector<8x8xi32>
    %85 = arith.select %82, %84, %72 : vector<8x8xi1>, vector<8x8xi32>
    %c6 = arith.constant 6 : index
    %c0_43 = arith.constant 0 : index
    %c0_44 = arith.constant 0 : index
    %86 = vector.load %arg10[%c6, %c0_43, %c0_44] : memref<8x8x4xf32, #tpu.memory_space<vmem>>, vector<1x8x4xf32>
    %87 = vector.shape_cast %86 : vector<1x8x4xf32> to vector<8x4xf32>
    %cst_45 = arith.constant 5.000000e-01 : f32
    %88 = vector.broadcast %cst_45 : f32 to vector<8x4xf32>
    %89 = arith.cmpf ogt, %87, %88 : vector<8x4xf32>
    %c0_i32_46 = arith.constant 0 : i32
    %90 = vector.broadcast %c0_i32_46 : i32 to vector<8x4xi32>
    %91 = arith.select %89, %4, %90 : vector<8x4xi1>, vector<8x4xi32>
    %cst_47 = arith.constant dense<0> : vector<8xi32>
    %92 = vector.multi_reduction <add>, %91, %cst_47 [1] : vector<8x4xi32> to vector<8xi32>
    %93 = vector.shape_cast %92 : vector<8xi32> to vector<8x1xi32>
    %c6_i32 = arith.constant 6 : i32
    %94 = vector.broadcast %c6_i32 : i32 to vector<8x8xi32>
    %95 = arith.cmpi eq, %6, %94 : vector<8x8xi32>
    %96 = vector.shape_cast %93 : vector<8x1xi32> to vector<8x1xi32>
    %97 = vector.broadcast %96 : vector<8x1xi32> to vector<8x8xi32>
    %98 = arith.select %95, %97, %85 : vector<8x8xi1>, vector<8x8xi32>
    %c7 = arith.constant 7 : index
    %c0_48 = arith.constant 0 : index
    %c0_49 = arith.constant 0 : index
    %99 = vector.load %arg10[%c7, %c0_48, %c0_49] : memref<8x8x4xf32, #tpu.memory_space<vmem>>, vector<1x8x4xf32>
    %100 = vector.shape_cast %99 : vector<1x8x4xf32> to vector<8x4xf32>
    %cst_50 = arith.constant 5.000000e-01 : f32
    %101 = vector.broadcast %cst_50 : f32 to vector<8x4xf32>
    %102 = arith.cmpf ogt, %100, %101 : vector<8x4xf32>
    %c0_i32_51 = arith.constant 0 : i32
    %103 = vector.broadcast %c0_i32_51 : i32 to vector<8x4xi32>
    %104 = arith.select %102, %4, %103 : vector<8x4xi1>, vector<8x4xi32>
    %cst_52 = arith.constant dense<0> : vector<8xi32>
    %105 = vector.multi_reduction <add>, %104, %cst_52 [1] : vector<8x4xi32> to vector<8xi32>
    %106 = vector.shape_cast %105 : vector<8xi32> to vector<8x1xi32>
    %c7_i32 = arith.constant 7 : i32
    %107 = vector.broadcast %c7_i32 : i32 to vector<8x8xi32>
    %108 = arith.cmpi eq, %6, %107 : vector<8x8xi32>
    %109 = vector.shape_cast %106 : vector<8x1xi32> to vector<8x1xi32>
    %110 = vector.broadcast %109 : vector<8x1xi32> to vector<8x8xi32>
    %111 = arith.select %108, %110, %98 : vector<8x8xi1>, vector<8x8xi32>
    %c0_53 = arith.constant 0 : index
    %c0_54 = arith.constant 0 : index
    %112 = vector.load %arg8[%c0_53, %c0_54] : memref<8x8xi32, #tpu.memory_space<vmem>>, vector<8x8xi32>
    tpu.vector_store %arg8[%c0_53, %c0_54], %111 {strides = array<i32>} : memref<8x8xi32, #tpu.memory_space<vmem>>, vector<8x8xi32>,
    return
  }
  func.func @transform_0(%arg0: i32) -> (i32, i32) {
    %c0_i32 = arith.constant 0 : i32
    %c0_i32_0 = arith.constant 0 : i32
    return %arg0, %c0_i32 : i32, i32
  }
  func.func @transform_1(%arg0: i32) -> (i32, i32, i32) {
    %c0_i32 = arith.constant 0 : i32
    %c0_i32_0 = arith.constant 0 : i32
    %c0_i32_1 = arith.constant 0 : i32
    return %c0_i32, %arg0, %c0_i32_0 : i32, i32, i32
  }
  func.func @transform_2(%arg0: i32) -> (i32, i32, i32) {
    %c0_i32 = arith.constant 0 : i32
    %c0_i32_0 = arith.constant 0 : i32
    %c0_i32_1 = arith.constant 0 : i32
    return %c0_i32, %arg0, %c0_i32_0 : i32, i32, i32
  }
  func.func @transform_3(%arg0: i32) -> (i32, i32, i32) {
    %c0_i32 = arith.constant 0 : i32
    %c0_i32_0 = arith.constant 0 : i32
    %c0_i32_1 = arith.constant 0 : i32
    %c0_i32_2 = arith.constant 0 : i32
    return %c0_i32, %c0_i32_0, %c0_i32_1 : i32, i32, i32
  }
  func.func @transform_4(%arg0: i32) -> (i32, i32, i32) {
    %c0_i32 = arith.constant 0 : i32
    %c0_i32_0 = arith.constant 0 : i32
    %c0_i32_1 = arith.constant 0 : i32
    %c0_i32_2 = arith.constant 0 : i32
    return %c0_i32, %c0_i32_0, %c0_i32_1 : i32, i32, i32
  }
  func.func @transform_5(%arg0: i32) -> (i32, i32) {
    %c0_i32 = arith.constant 0 : i32
    %c0_i32_0 = arith.constant 0 : i32
    %c0_i32_1 = arith.constant 0 : i32
    return %c0_i32, %c0_i32_0 : i32, i32
  }
  func.func @transform_6(%arg0: i32) -> (i32, i32) {
    %c0_i32 = arith.constant 0 : i32
    %c0_i32_0 = arith.constant 0 : i32
    %c0_i32_1 = arith.constant 0 : i32
    return %c0_i32, %c0_i32_0 : i32, i32
  }
  func.func @transform_7(%arg0: i32) -> (i32, i32) {
    %c0_i32 = arith.constant 0 : i32
    %c0_i32_0 = arith.constant 0 : i32
    return %arg0, %c0_i32 : i32, i32
  }
}

</mosaic_0001>

<llo_original>
// kernel: tile.22
$region0: #{tile.22}
  %s0 = inlined_call_operand.vmem [shape: f32[8,4,4,32], index: 0, kind: input, shape index: {}]
  %s1 = inlined_call_operand.vmem [shape: f32[8,4,128], index: 1, kind: output, shape index: {}]
  $region1: #{tile.22} parent=0
    #allocation0 [shape = 'u8[32768]{0}', space=vmem, size = 0x8000, scoped, tag = 'scoped mem for output reshape']
    #allocation1 [shape = 'u8[131072]{0}', space=vmem, size = 0x20000, scoped, tag = 'scoped mem for input reshape']
    %s3 = ssub.s32 16, 1
    %s4 = scalar_lea.vmem %s0, 124
    %v5 = vld [vmem:[%s4] sm:%s3]
    %s6 = scalar_lea.vmem [#allocation1], 248
    %7 = vst [vmem:[%s6] sm:%s3] %v5
    %s8 = scalar_lea.vmem %s0, 120
    %v9 = vld [vmem:[%s8] sm:%s3]
    %s10 = scalar_lea.vmem [#allocation1], 240
    %11 = vst [vmem:[%s10] sm:%s3] %v9
    %s12 = scalar_lea.vmem %s0, 116
    %v13 = vld [vmem:[%s12] sm:%s3]
    %s14 = scalar_lea.vmem [#allocation1], 232
    %15 = vst [vmem:[%s14] sm:%s3] %v13
    %s16 = scalar_lea.vmem %s0, 112
    %v17 = vld [vmem:[%s16] sm:%s3]
    %s18 = scalar_lea.vmem [#allocation1], 224
    %19 = vst [vmem:[%s18] sm:%s3] %v17
    %s20 = scalar_lea.vmem %s0, 108
    %v21 = vld [vmem:[%s20] sm:%s3]
    %s22 = scalar_lea.vmem [#allocation1], 216
    %23 = vst [vmem:[%s22] sm:%s3] %v21
    %s24 = scalar_lea.vmem %s0, 104
    %v25 = vld [vmem:[%s24] sm:%s3]
    %s26 = scalar_lea.vmem [#allocation1], 208
    %27 = vst [vmem:[%s26] sm:%s3] %v25
    %s28 = scalar_lea.vmem %s0, 100
    %v29 = vld [vmem:[%s28] sm:%s3]
    %s30 = scalar_lea.vmem [#allocation1], 200
    %31 = vst [vmem:[%s30] sm:%s3] %v29
    %s32 = scalar_lea.vmem %s0, 96
    %v33 = vld [vmem:[%s32] sm:%s3]
    %s34 = scalar_lea.vmem [#allocation1], 192
    %35 = vst [vmem:[%s34] sm:%s3] %v33
    %s36 = scalar_lea.vmem %s0, 92
    %v37 = vld [vmem:[%s36] sm:%s3]
    %s38 = scalar_lea.vmem [#allocation1], 184
    %39 = vst [vmem:[%s38] sm:%s3] %v37
    %s40 = scalar_lea.vmem %s0, 88
    %v41 = vld [vmem:[%s40] sm:%s3]
    %s42 = scalar_lea.vmem [#allocation1], 176
    %43 = vst [vmem:[%s42] sm:%s3] %v41
    %s44 = scalar_lea.vmem %s0, 84
    %v45 = vld [vmem:[%s44] sm:%s3]
    %s46 = scalar_lea.vmem [#allocation1], 168
    %47 = vst [vmem:[%s46] sm:%s3] %v45
    %s48 = scalar_lea.vmem %s0, 80
    %v49 = vld [vmem:[%s48] sm:%s3]
    %s50 = scalar_lea.vmem [#allocation1], 160
    %51 = vst [vmem:[%s50] sm:%s3] %v49
    %s52 = scalar_lea.vmem %s0, 76
    %v53 = vld [vmem:[%s52] sm:%s3]
    %s54 = scalar_lea.vmem [#allocation1], 152
    %55 = vst [vmem:[%s54] sm:%s3] %v53
    %s56 = scalar_lea.vmem %s0, 72
    %v57 = vld [vmem:[%s56] sm:%s3]
    %s58 = scalar_lea.vmem [#allocation1], 144
    %59 = vst [vmem:[%s58] sm:%s3] %v57
    %s60 = scalar_lea.vmem %s0, 68
    %v61 = vld [vmem:[%s60] sm:%s3]
    %s62 = scalar_lea.vmem [#allocation1], 136
    %63 = vst [vmem:[%s62] sm:%s3] %v61
    %s64 = scalar_lea.vmem %s0, 64
    %v65 = vld [vmem:[%s64] sm:%s3]
    %s66 = scalar_lea.vmem [#allocation1], 128
    %67 = vst [vmem:[%s66] sm:%s3] %v65
    %s68 = scalar_lea.vmem %s0, 60
    %v69 = vld [vmem:[%s68] sm:%s3]
    %s70 = scalar_lea.vmem [#allocation1], 120
    %71 = vst [vmem:[%s70] sm:%s3] %v69
    %s72 = scalar_lea.vmem %s0, 56
    %v73 = vld [vmem:[%s72] sm:%s3]
    %s74 = scalar_lea.vmem [#allocation1], 112
    %75 = vst [vmem:[%s74] sm:%s3] %v73
    %s76 = scalar_lea.vmem %s0, 52
    %v77 = vld [vmem:[%s76] sm:%s3]
    %s78 = scalar_lea.vmem [#allocation1], 104
    %79 = vst [vmem:[%s78] sm:%s3] %v77
    %s80 = scalar_lea.vmem %s0, 48
    %v81 = vld [vmem:[%s80] sm:%s3]
    %s82 = scalar_lea.vmem [#allocation1], 96
    %83 = vst [vmem:[%s82] sm:%s3] %v81
    %s84 = scalar_lea.vmem %s0, 44
    %v85 = vld [vmem:[%s84] sm:%s3]
    %s86 = scalar_lea.vmem [#allocation1], 88
    %87 = vst [vmem:[%s86] sm:%s3] %v85
    %s88 = scalar_lea.vmem %s0, 40
    %v89 = vld [vmem:[%s88] sm:%s3]
    %s90 = scalar_lea.vmem [#allocation1], 80
    %91 = vst [vmem:[%s90] sm:%s3] %v89
    %s92 = scalar_lea.vmem %s0, 36
    %v93 = vld [vmem:[%s92] sm:%s3]
    %s94 = scalar_lea.vmem [#allocation1], 72
    %95 = vst [vmem:[%s94] sm:%s3] %v93
    %s96 = scalar_lea.vmem %s0, 32
    %v97 = vld [vmem:[%s96] sm:%s3]
    %s98 = scalar_lea.vmem [#allocation1], 64
    %99 = vst [vmem:[%s98] sm:%s3] %v97
    %s100 = scalar_lea.vmem %s0, 28
    %v101 = vld [vmem:[%s100] sm:%s3]
    %s102 = scalar_lea.vmem [#allocation1], 56
    %103 = vst [vmem:[%s102] sm:%s3] %v101
    %s104 = scalar_lea.vmem %s0, 24
    %v105 = vld [vmem:[%s104] sm:%s3]
    %s106 = scalar_lea.vmem [#allocation1], 48
    %107 = vst [vmem:[%s106] sm:%s3] %v105
    %s108 = scalar_lea.vmem %s0, 20
    %v109 = vld [vmem:[%s108] sm:%s3]
    %s110 = scalar_lea.vmem [#allocation1], 40
    %111 = vst [vmem:[%s110] sm:%s3] %v109
    %s112 = scalar_lea.vmem %s0, 16
    %v113 = vld [vmem:[%s112] sm:%s3]
    %s114 = scalar_lea.vmem [#allocation1], 32
    %115 = vst [vmem:[%s114] sm:%s3] %v113
    %s116 = scalar_lea.vmem %s0, 12
    %v117 = vld [vmem:[%s116] sm:%s3]
    %s118 = scalar_lea.vmem [#allocation1], 24
    %119 = vst [vmem:[%s118] sm:%s3] %v117
    %s120 = scalar_lea.vmem %s0, 8
    %v121 = vld [vmem:[%s120] sm:%s3]
    %s122 = scalar_lea.vmem [#allocation1], 16
    %123 = vst [vmem:[%s122] sm:%s3] %v121
    %s124 = scalar_lea.vmem %s0, 4
    %v125 = vld [vmem:[%s124] sm:%s3]
    %s126 = scalar_lea.vmem [#allocation1], 8
    %127 = vst [vmem:[%s126] sm:%s3] %v125
    %v128 = vld [vmem:[%s0] sm:%s3]
    %129 = vst [vmem:[#allocation1] sm:%s3] %v128
    %v130 = vld [vmem:[#allocation1] ss:$8 sm:$0xf]
    %v131 = vld [vmem:[#allocation1] ss:$8 sm:$0xf0]
    %vm132 = vcmask 1047556
    %v133 = vsel %vm132, %v131, %v130
    %vm134 = vcmask 261120
    %135 = vst.msk [vmem:[#allocation0] sm:$0xf] %vm134, %v133
    %s136 = scalar_lea.vmem [#allocation0], 4
    %137 = vst.msk [vmem:[%s136] sm:$0xf0] %vm134, %v133
    %s138 = scalar_lea.vmem [#allocation1], 64
    %v139 = vld [vmem:[%s138] ss:$8 sm:$0xf]
    %s140 = scalar_lea.vmem [#allocation1], 64
    %v141 = vld [vmem:[%s140] ss:$8 sm:$0xf0]
    %vm142 = vcmask 1047556
    %v143 = vsel %vm142, %v141, %v139
    %vm144 = vcmask 261120
    %s145 = scalar_lea.vmem [#allocation0], 16
    %146 = vst.msk [vmem:[%s145] sm:$0xf] %vm144, %v143
    %s147 = scalar_lea.vmem [#allocation0], 20
    %148 = vst.msk [vmem:[%s147] sm:$0xf0] %vm144, %v143
    %s149 = scalar_lea.vmem [#allocation1], 128
    %v150 = vld [vmem:[%s149] ss:$8 sm:$0xf]
    %s151 = scalar_lea.vmem [#allocation1], 128
    %v152 = vld [vmem:[%s151] ss:$8 sm:$0xf0]
    %vm153 = vcmask 1047556
    %v154 = vsel %vm153, %v152, %v150
    %vm155 = vcmask 261120
    %s156 = scalar_lea.vmem [#allocation0], 32
    %157 = vst.msk [vmem:[%s156] sm:$0xf] %vm155, %v154
    %s158 = scalar_lea.vmem [#allocation0], 36
    %159 = vst.msk [vmem:[%s158] sm:$0xf0] %vm155, %v154
    %s160 = scalar_lea.vmem [#allocation1], 192
    %v161 = vld [vmem:[%s160] ss:$8 sm:$0xf]
    %s162 = scalar_lea.vmem [#allocation1], 192
    %v163 = vld [vmem:[%s162] ss:$8 sm:$0xf0]
    %vm164 = vcmask 1047556
    %v165 = vsel %vm164, %v163, %v161
    %vm166 = vcmask 261120
    %s167 = scalar_lea.vmem [#allocation0], 48
    %168 = vst.msk [vmem:[%s167] sm:$0xf] %vm166, %v165
    %s169 = scalar_lea.vmem [#allocation0], 52
    %170 = vst.msk [vmem:[%s169] sm:$0xf0] %vm166, %v165
    %s171 = scalar_lea.vmem [#allocation1], 3
    %v172 = vld [vmem:[%s171] ss:$8 sm:$0xf]
    %s173 = scalar_lea.vmem [#allocation1], 3
    %v174 = vld [vmem:[%s173] ss:$8 sm:$0xf0]
    %vm175 = vcmask 1047556
    %v176 = vsel %vm175, %v174, %v172
    %177 = vrot.lane.b32.xlu0 %v176, 96
    %v178 = vpop.permute.xlu0 %177
    %vm179 = vcmask 1048320
    %180 = vst.msk [vmem:[#allocation0] sm:$0xf] %vm179, %v178
    %s181 = scalar_lea.vmem [#allocation0], 4
    %182 = vst.msk [vmem:[%s181] sm:$0xf0] %vm179, %v178
    %s183 = scalar_lea.vmem [#allocation1], 131
    %v184 = vld [vmem:[%s183] ss:$8 sm:$0xf]
    %s185 = scalar_lea.vmem [#allocation1], 131
    %v186 = vld [vmem:[%s185] ss:$8 sm:$0xf0]
    %vm187 = vcmask 1047556
    %v188 = vsel %vm187, %v186, %v184
    %189 = vrot.lane.b32.xlu0 %v188, 96
    %v190 = vpop.permute.xlu0 %189
    %vm191 = vcmask 1048320
    %s192 = scalar_lea.vmem [#allocation0], 32
    %193 = vst.msk [vmem:[%s192] sm:$0xf] %vm191, %v190
    %s194 = scalar_lea.vmem [#allocation0], 36
    %195 = vst.msk [vmem:[%s194] sm:$0xf0] %vm191, %v190
    %s196 = scalar_lea.vmem [#allocation1], 67
    %v197 = vld [vmem:[%s196] ss:$8 sm:$0xf]
    %s198 = scalar_lea.vmem [#allocation1], 67
    %v199 = vld [vmem:[%s198] ss:$8 sm:$0xf0]
    %vm200 = vcmask 1047556
    %v201 = vsel %vm200, %v199, %v197
    %202 = vrot.lane.b32.xlu0 %v201, 96
    %v203 = vpop.permute.xlu0 %202
    %vm204 = vcmask 1048320
    %s205 = scalar_lea.vmem [#allocation0], 16
    %206 = vst.msk [vmem:[%s205] sm:$0xf] %vm204, %v203
    %s207 = scalar_lea.vmem [#allocation0], 20
    %208 = vst.msk [vmem:[%s207] sm:$0xf0] %vm204, %v203
    %s209 = scalar_lea.vmem [#allocation1], 195
    %v210 = vld [vmem:[%s209] ss:$8 sm:$0xf]
    %s211 = scalar_lea.vmem [#allocation1], 195
    %v212 = vld [vmem:[%s211] ss:$8 sm:$0xf0]
    %vm213 = vcmask 1047556
    %v214 = vsel %vm213, %v212, %v210
    %215 = vrot.lane.b32.xlu0 %v214, 96
    %v216 = vpop.permute.xlu0 %215
    %vm217 = vcmask 1048320
    %s218 = scalar_lea.vmem [#allocation0], 48
    %219 = vst.msk [vmem:[%s218] sm:$0xf] %vm217, %v216
    %s220 = scalar_lea.vmem [#allocation0], 52
    %221 = vst.msk [vmem:[%s220] sm:$0xf0] %vm217, %v216
    %s222 = scalar_lea.vmem [#allocation1], 2
    %v223 = vld [vmem:[%s222] ss:$8 sm:$0xf]
    %s224 = scalar_lea.vmem [#allocation1], 2
    %v225 = vld [vmem:[%s224] ss:$8 sm:$0xf0]
    %vm226 = vcmask 1047556
    %v227 = vsel %vm226, %v225, %v223
    %228 = vrot.lane.b32.xlu0 %v227, 64
    %v229 = vpop.permute.xlu0 %228
    %vm230 = vcmask 785920
    %231 = vst.msk [vmem:[#allocation0] sm:$0xf] %vm230, %v229
    %s232 = scalar_lea.vmem [#allocation0], 4
    %233 = vst.msk [vmem:[%s232] sm:$0xf0] %vm230, %v229
    %s234 = scalar_lea.vmem [#allocation1], 130
    %v235 = vld [vmem:[%s234] ss:$8 sm:$0xf]
    %s236 = scalar_lea.vmem [#allocation1], 130
    %v237 = vld [vmem:[%s236] ss:$8 sm:$0xf0]
    %vm238 = vcmask 1047556
    %v239 = vsel %vm238, %v237, %v235
    %240 = vrot.lane.b32.xlu0 %v239, 64
    %v241 = vpop.permute.xlu0 %240
    %vm242 = vcmask 785920
    %s243 = scalar_lea.vmem [#allocation0], 32
    %244 = vst.msk [vmem:[%s243] sm:$0xf] %vm242, %v241
    %s245 = scalar_lea.vmem [#allocation0], 36
    %246 = vst.msk [vmem:[%s245] sm:$0xf0] %vm242, %v241
    %s247 = scalar_lea.vmem [#allocation1], 66
    %v248 = vld [vmem:[%s247] ss:$8 sm:$0xf]
    %s249 = scalar_lea.vmem [#allocation1], 66
    %v250 = vld [vmem:[%s249] ss:$8 sm:$0xf0]
    %vm251 = vcmask 1047556
    %v252 = vsel %vm251, %v250, %v248
    %253 = vrot.lane.b32.xlu0 %v252, 64
    %v254 = vpop.permute.xlu0 %253
    %vm255 = vcmask 785920
    %s256 = scalar_lea.vmem [#allocation0], 16
    %257 = vst.msk [vmem:[%s256] sm:$0xf] %vm255, %v254
    %s258 = scalar_lea.vmem [#allocation0], 20
    %259 = vst.msk [vmem:[%s258] sm:$0xf0] %vm255, %v254
    %s260 = scalar_lea.vmem [#allocation1], 194
    %v261 = vld [vmem:[%s260] ss:$8 sm:$0xf]
    %s262 = scalar_lea.vmem [#allocation1], 194
    %v263 = vld [vmem:[%s262] ss:$8 sm:$0xf0]
    %vm264 = vcmask 1047556
    %v265 = vsel %vm264, %v263, %v261
    %266 = vrot.lane.b32.xlu0 %v265, 64
    %v267 = vpop.permute.xlu0 %266
    %vm268 = vcmask 785920
    %s269 = scalar_lea.vmem [#allocation0], 48
    %270 = vst.msk [vmem:[%s269] sm:$0xf] %vm268, %v267
    %s271 = scalar_lea.vmem [#allocation0], 52
    %272 = vst.msk [vmem:[%s271] sm:$0xf0] %vm268, %v267
    %s273 = scalar_lea.vmem [#allocation1], 1
    %v274 = vld [vmem:[%s273] ss:$8 sm:$0xf]
    %s275 = scalar_lea.vmem [#allocation1], 1
    %v276 = vld [vmem:[%s275] ss:$8 sm:$0xf0]
    %vm277 = vcmask 1047556
    %v278 = vsel %vm277, %v276, %v274
    %279 = vrot.lane.b32.xlu0 %v278, 32
    %v280 = vpop.permute.xlu0 %279
    %vm281 = vcmask 523520
    %282 = vst.msk [vmem:[#allocation0] sm:$0xf] %vm281, %v280
    %s283 = scalar_lea.vmem [#allocation0], 4
    %284 = vst.msk [vmem:[%s283] sm:$0xf0] %vm281, %v280
    %s285 = scalar_lea.vmem [#allocation1], 129
    %v286 = vld [vmem:[%s285] ss:$8 sm:$0xf]
    %s287 = scalar_lea.vmem [#allocation1], 129
    %v288 = vld [vmem:[%s287] ss:$8 sm:$0xf0]
    %vm289 = vcmask 1047556
    %v290 = vsel %vm289, %v288, %v286
    %291 = vrot.lane.b32.xlu0 %v290, 32
    %v292 = vpop.permute.xlu0 %291
    %vm293 = vcmask 523520
    %s294 = scalar_lea.vmem [#allocation0], 32
    %295 = vst.msk [vmem:[%s294] sm:$0xf] %vm293, %v292
    %s296 = scalar_lea.vmem [#allocation0], 36
    %297 = vst.msk [vmem:[%s296] sm:$0xf0] %vm293, %v292
    %s298 = scalar_lea.vmem [#allocation1], 65
    %v299 = vld [vmem:[%s298] ss:$8 sm:$0xf]
    %s300 = scalar_lea.vmem [#allocation1], 65
    %v301 = vld [vmem:[%s300] ss:$8 sm:$0xf0]
    %vm302 = vcmask 1047556
    %v303 = vsel %vm302, %v301, %v299
    %304 = vrot.lane.b32.xlu0 %v303, 32
    %v305 = vpop.permute.xlu0 %304
    %vm306 = vcmask 523520
    %s307 = scalar_lea.vmem [#allocation0], 16
    %308 = vst.msk [vmem:[%s307] sm:$0xf] %vm306, %v305
    %s309 = scalar_lea.vmem [#allocation0], 20
    %310 = vst.msk [vmem:[%s309] sm:$0xf0] %vm306, %v305
    %s311 = scalar_lea.vmem [#allocation1], 193
    %v312 = vld [vmem:[%s311] ss:$8 sm:$0xf]
    %s313 = scalar_lea.vmem [#allocation1], 193
    %v314 = vld [vmem:[%s313] ss:$8 sm:$0xf0]
    %vm315 = vcmask 1047556
    %v316 = vsel %vm315, %v314, %v312
    %317 = vrot.lane.b32.xlu0 %v316, 32
    %v318 = vpop.permute.xlu0 %317
    %vm319 = vcmask 523520
    %s320 = scalar_lea.vmem [#allocation0], 48
    %321 = vst.msk [vmem:[%s320] sm:$0xf] %vm319, %v318
    %s322 = scalar_lea.vmem [#allocation0], 52
    %323 = vst.msk [vmem:[%s322] sm:$0xf0] %vm319, %v318
    %s325 = ssub.s32 16, 1
    %v326 = vld [vmem:[#allocation0] sm:%s325]
    %s328 = ssub.s32 16, 1
    %329 = vst [vmem:[%s1] sm:%s328] %v326
    %s330 = scalar_lea.vmem [#allocation0], 8
    %v331 = vld [vmem:[%s330] sm:%s325]
    %s333 = ssub.s32 16, 1
    %s334 = scalar_lea.vmem %s1, 4
    %335 = vst [vmem:[%s334] sm:%s333] %v331
    %s336 = scalar_lea.vmem [#allocation0], 16
    %v337 = vld [vmem:[%s336] sm:%s325]
    %s339 = ssub.s32 16, 1
    %s340 = scalar_lea.vmem %s1, 8
    %341 = vst [vmem:[%s340] sm:%s339] %v337
    %s342 = scalar_lea.vmem [#allocation0], 24
    %v343 = vld [vmem:[%s342] sm:%s325]
    %s345 = ssub.s32 16, 1
    %s346 = scalar_lea.vmem %s1, 12
    %347 = vst [vmem:[%s346] sm:%s345] %v343
    %s348 = scalar_lea.vmem [#allocation0], 32
    %v349 = vld [vmem:[%s348] sm:%s325]
    %s351 = ssub.s32 16, 1
    %s352 = scalar_lea.vmem %s1, 16
    %353 = vst [vmem:[%s352] sm:%s351] %v349
    %s354 = scalar_lea.vmem [#allocation0], 40
    %v355 = vld [vmem:[%s354] sm:%s325]
    %s357 = ssub.s32 16, 1
    %s358 = scalar_lea.vmem %s1, 20
    %359 = vst [vmem:[%s358] sm:%s357] %v355
    %s360 = scalar_lea.vmem [#allocation0], 48
    %v361 = vld [vmem:[%s360] sm:%s325]
    %s363 = ssub.s32 16, 1
    %s364 = scalar_lea.vmem %s1, 24
    %365 = vst [vmem:[%s364] sm:%s363] %v361
    %s366 = scalar_lea.vmem [#allocation0], 56
    %v367 = vld [vmem:[%s366] sm:%s325]
    %s369 = ssub.s32 16, 1
    %s370 = scalar_lea.vmem %s1, 28
    %371 = vst [vmem:[%s370] sm:%s369] %v367

// kernel: tile.18
$region0: #{tile.18}
  %s0 = inlined_call_operand.vmem [shape: f32[8,4,32], index: 0, kind: input, shape index: {}]
  %s1 = inlined_call_operand.vmem [shape: f32[8,128], index: 1, kind: output, shape index: {}]
  $region1: #{tile.18} parent=0
    #allocation0 [shape = 'u8[32768]{0}', space=vmem, size = 0x8000, scoped, tag = 'scoped mem for input reshape']
    %s3 = ssub.s32 16, 1
    %s4 = scalar_lea.vmem %s0, 28
    %v5 = vld [vmem:[%s4] sm:%s3]
    %s6 = scalar_lea.vmem [#allocation0], 56
    %7 = vst [vmem:[%s6] sm:%s3] %v5
    %s8 = scalar_lea.vmem %s0, 24
    %v9 = vld [vmem:[%s8] sm:%s3]
    %s10 = scalar_lea.vmem [#allocation0], 48
    %11 = vst [vmem:[%s10] sm:%s3] %v9
    %s12 = scalar_lea.vmem %s0, 20
    %v13 = vld [vmem:[%s12] sm:%s3]
    %s14 = scalar_lea.vmem [#allocation0], 40
    %15 = vst [vmem:[%s14] sm:%s3] %v13
    %s16 = scalar_lea.vmem %s0, 16
    %v17 = vld [vmem:[%s16] sm:%s3]
    %s18 = scalar_lea.vmem [#allocation0], 32
    %19 = vst [vmem:[%s18] sm:%s3] %v17
    %s20 = scalar_lea.vmem %s0, 12
    %v21 = vld [vmem:[%s20] sm:%s3]
    %s22 = scalar_lea.vmem [#allocation0], 24
    %23 = vst [vmem:[%s22] sm:%s3] %v21
    %s24 = scalar_lea.vmem %s0, 8
    %v25 = vld [vmem:[%s24] sm:%s3]
    %s26 = scalar_lea.vmem [#allocation0], 16
    %27 = vst [vmem:[%s26] sm:%s3] %v25
    %s28 = scalar_lea.vmem %s0, 4
    %v29 = vld [vmem:[%s28] sm:%s3]
    %s30 = scalar_lea.vmem [#allocation0], 8
    %31 = vst [vmem:[%s30] sm:%s3] %v29
    %v32 = vld [vmem:[%s0] sm:%s3]
    %33 = vst [vmem:[#allocation0] sm:%s3] %v32
    %v34 = vld [vmem:[#allocation0] ss:$8 sm:$0xf]
    %v35 = vld [vmem:[#allocation0] ss:$8 sm:$0xf0]
    %vm36 = vcmask 1047556
    %v37 = vsel %vm36, %v35, %v34
    %vm38 = vcmask 261120
    %39 = vst.msk [vmem:[%s1] sm:$0xff] %vm38, %v37
    %s40 = scalar_lea.vmem [#allocation0], 3
    %v41 = vld [vmem:[%s40] ss:$8 sm:$0xf]
    %s42 = scalar_lea.vmem [#allocation0], 3
    %v43 = vld [vmem:[%s42] ss:$8 sm:$0xf0]
    %vm44 = vcmask 1047556
    %v45 = vsel %vm44, %v43, %v41
    %46 = vrot.lane.b32.xlu0 %v45, 96
    %v47 = vpop.permute.xlu0 %46
    %vm48 = vcmask 1048320
    %49 = vst.msk [vmem:[%s1] sm:$0xff] %vm48, %v47
    %s50 = scalar_lea.vmem [#allocation0], 2
    %v51 = vld [vmem:[%s50] ss:$8 sm:$0xf]
    %s52 = scalar_lea.vmem [#allocation0], 2
    %v53 = vld [vmem:[%s52] ss:$8 sm:$0xf0]
    %vm54 = vcmask 1047556
    %v55 = vsel %vm54, %v53, %v51
    %56 = vrot.lane.b32.xlu0 %v55, 64
    %v57 = vpop.permute.xlu0 %56
    %vm58 = vcmask 785920
    %59 = vst.msk [vmem:[%s1] sm:$0xff] %vm58, %v57
    %s60 = scalar_lea.vmem [#allocation0], 1
    %v61 = vld [vmem:[%s60] ss:$8 sm:$0xf]
    %s62 = scalar_lea.vmem [#allocation0], 1
    %v63 = vld [vmem:[%s62] ss:$8 sm:$0xf0]
    %vm64 = vcmask 1047556
    %v65 = vsel %vm64, %v63, %v61
    %66 = vrot.lane.b32.xlu0 %v65, 32
    %v67 = vpop.permute.xlu0 %66
    %vm68 = vcmask 523520
    %69 = vst.msk [vmem:[%s1] sm:$0xff] %vm68, %v67

// kernel: gibbs_sweep.1
$region0: #{gibbs_sweep.1}
  #allocation0 [shape = 'u32[]', space=smem, size = 0x4, offset = 0x4, fixed_abs, tag = 'smem constant byte address 0x4 - core index']
  #allocation1 [shape = 'u32[72,128]{1,0:T(1,128)}', space=vmem, size = 0x9000, scoped, tag = 'internal scratch']
  #allocation2 [shape = 'f32[8,128]{1,0:T(8,128)}', space=vmem, size = 0x1000, scoped, tag = 'scratch operand']
  #allocation3 [shape = 'f32[8,8,4]{2,1,0:T(8,128)}', space=vmem, size = 0x8000, scoped, tag = 'scratch operand']
  %s0 = inlined_call_operand.vmem [shape: f32[8,128], index: 0, kind: input, shape index: {}]
  %s1 = inlined_call_operand.vmem [shape: f32[8,8,4], index: 1, kind: input, shape index: {}]
  %s2 = inlined_call_operand.vmem [shape: f32[16,8,1], index: 2, kind: input, shape index: {}]
  %s3 = inlined_call_operand.vmem [shape: f32[8,4,128], index: 3, kind: input, shape index: {}]
  %s4 = inlined_call_operand.vmem [shape: f32[8,1,128], index: 4, kind: input, shape index: {}]
  %s5 = inlined_call_operand.vmem [shape: f32[128,4], index: 5, kind: input, shape index: {}]
  %s6 = inlined_call_operand.vmem [shape: f32[4,4], index: 6, kind: input, shape index: {}]
  %s7 = inlined_call_operand.hbm [shape: s32[8,8], index: 7, kind: output, shape index: {}]
  %s8 = sld [smem:[#allocation0]]
  $region45: #{gibbs_sweep.1} parent=0
    _
  %s10 = ssub.s32 1, %s8
  %s11 = scalar_select 0, %s10, %s8
  $region1: #{gibbs_sweep.1} parent=0
    #allocation4 [shape = 'u8[4096]{0}', space=vmem, size = 0x1000, scoped, tag = 'output window, operand 0, single buffered']
    #allocation5 [shape = 's32[1]{0}', space=sflag, size = 0x4, scoped, tag = 'scoped memory for gibbs_sweep.1']
    %12 = vsyncpa [#allocation5], 0
    // Predicated region
    $region2: #{gibbs_sweep.1} parent=1 // pred_check
      _
    $region3: #{gibbs_sweep.1} parent=1 // pred_check_branch
      %14 = sbr.rel (0) target = $region5
    $region4: #{gibbs_sweep.1} parent=1 // pred_region
      _
    $region5: #{gibbs_sweep.1} parent=1 // pred_fallthru
      _
    // Predicated region
    $region6: #{gibbs_sweep.1} parent=1 // pred_check
      _
    $region7: #{gibbs_sweep.1} parent=1 // pred_check_branch
      %16 = sbr.rel (0) target = $region9
    $region8: #{gibbs_sweep.1} parent=1 // pred_region
      _
    $region9: #{gibbs_sweep.1} parent=1 // pred_fallthru
      _
    // Predicated region
    $region10: #{gibbs_sweep.1} parent=1 // pred_check
      _
    $region11: #{gibbs_sweep.1} parent=1 // pred_check_branch
      %18 = sbr.rel (0) target = $region13
    $region12: #{gibbs_sweep.1} parent=1 // pred_region
      _
    $region13: #{gibbs_sweep.1} parent=1 // pred_fallthru
      _
    // Predicated region
    $region14: #{gibbs_sweep.1} parent=1 // pred_check
      _
    $region15: #{gibbs_sweep.1} parent=1 // pred_check_branch
      %20 = sbr.rel (0) target = $region17
    $region16: #{gibbs_sweep.1} parent=1 // pred_region
      _
    $region17: #{gibbs_sweep.1} parent=1 // pred_fallthru
      _
    // Predicated region
    $region18: #{gibbs_sweep.1} parent=1 // pred_check
      _
    $region19: #{gibbs_sweep.1} parent=1 // pred_check_branch
      %22 = sbr.rel (0) target = $region21
    $region20: #{gibbs_sweep.1} parent=1 // pred_region
      _
    $region21: #{gibbs_sweep.1} parent=1 // pred_fallthru
      _
    // Predicated region
    $region22: #{gibbs_sweep.1} parent=1 // pred_check
      _
    $region23: #{gibbs_sweep.1} parent=1 // pred_check_branch
      %24 = sbr.rel (0) target = $region25
    $region24: #{gibbs_sweep.1} parent=1 // pred_region
      _
    $region25: #{gibbs_sweep.1} parent=1 // pred_fallthru
      _
    // Predicated region
    $region26: #{gibbs_sweep.1} parent=1 // pred_check
      _
    $region27: #{gibbs_sweep.1} parent=1 // pred_check_branch
      %26 = sbr.rel (0) target = $region29
    $region28: #{gibbs_sweep.1} parent=1 // pred_region
      _
    $region29: #{gibbs_sweep.1} parent=1 // pred_fallthru
      _
    %v27 = vld [vmem:[%s0] sm:$0xff]
    %28 = vst [vmem:[#allocation2] sm:$0xff] %v27
    %v29 = vld [vmem:[%s1] sm:$0xff]
    %v30 = vld [vmem:[%s1 + $0x8] sm:$0xff]
    %v31 = vld [vmem:[%s1 + $0x10] sm:$0xff]
    %v32 = vld [vmem:[%s1 + $0x18] sm:$0xff]
    %v33 = vld [vmem:[%s1 + $0x20] sm:$0xff]
    %v34 = vld [vmem:[%s1 + $0x28] sm:$0xff]
    %v35 = vld [vmem:[%s1 + $0x30] sm:$0xff]
    %v36 = vld [vmem:[%s1 + $0x38] sm:$0xff]
    %vm37 = vcmask 31744
    %38 = vst.msk [vmem:[#allocation3] sm:$0xff] %vm37, %v29
    %39 = vst.msk [vmem:[#allocation3 + $0x8] sm:$0xff] %vm37, %v30
    %40 = vst.msk [vmem:[#allocation3 + $0x10] sm:$0xff] %vm37, %v31
    %41 = vst.msk [vmem:[#allocation3 + $0x18] sm:$0xff] %vm37, %v32
    %42 = vst.msk [vmem:[#allocation3 + $0x20] sm:$0xff] %vm37, %v33
    %43 = vst.msk [vmem:[#allocation3 + $0x28] sm:$0xff] %vm37, %v34
    %44 = vst.msk [vmem:[#allocation3 + $0x30] sm:$0xff] %vm37, %v35
    %45 = vst.msk [vmem:[#allocation3 + $0x38] sm:$0xff] %vm37, %v36
    %v46 = vlaneseq
    %v47 = vand.u32 %v46, 127
    loop: start=0, step=1, limit=16
    $region30: #{gibbs_sweep.1} parent=1 // loop_pre_header
      _
    $region31: #{gibbs_sweep.1} parent=1 // loop_header
      %s49 = sphi 0, %s53
      %p50 = scmp.ge.s32.totalorder %s49, 16
    $region32: #{gibbs_sweep.1} parent=1 // loop_header_branch
      %52 = sbr.rel (%p50) target = $region36
    $region33: #{gibbs_sweep.1} parent=1 // loop_body
      %p54 = scmp.lt.s32.totalorder %s49, 0
      %s55 = ssub.s32 0, %s49
      %s56 = scalar_select %p54, %s55, %s49
      %s57 = sand.u32 %s56, 7
      %s58 = ssub.s32 0, %s57
      %s59 = scalar_select %p54, %s58, %s57
      %p60 = scmp.ne.s32.totalorder %s59, 0
      %p61 = scmp.lt.s32.totalorder %s59, 0
      %p62 = pnand %p61, %p60
      %p63 = pneg %p62
      %s64 = sadd.s32 %s59, 8
      %s65 = scalar_select %p63, %s64, %s59
      %s66 = smul.u32 %s65, 8
      %s67 = scalar_lea.vmem [#allocation3], %s66
      %v68 = vld [vmem:[%s67] sm:$0xff]
      %s69 = smul.u32 %s65, 4
      %s70 = scalar_lea.vmem %s3, %s69
      %v71 = vld [vmem:[%s70] sm:$0xf]
      %s72 = scalar_lea.vmem %s4, %s65
      %v73 = vld [vmem:[%s72] sm:$0x1]
      %v74 = vld [vmem:[#allocation2] sm:$0xff]
      %v76 = vsel %vm37, %v68, 0
      %vm78 = vcmask 1043456
      %v80 = vsel %vm78, %v71, 0
      %82 = vmatpush.msra.mxu0 0.0
      %83 = vmatpush.msra.mxu0 0.0
      %84 = vmatpush.msra.mxu0 0.0
      %85 = vmatpush.msra.mxu0 0.0
      %86 = vmatpush.msra.mxu0 0.0
      %87 = vmatpush.msra.mxu0 0.0
      %88 = vmatpush.msra.mxu0 0.0
      %89 = vmatpush.msra.mxu0 0.0
      %90 = vmatpush.msra.mxu0 0.0
      %91 = vmatpush.msra.mxu0 0.0
      %92 = vmatpush.msra.mxu0 0.0
      %93 = vmatpush.msra.mxu0 0.0
      %94 = vmatpush.msra.mxu0 0.0
      %95 = vmatpush.msra.mxu0 0.0
      %96 = vmatpush.msra.mxu0 0.0
      %97 = vmatpush.msra.mxu0 %v80
      %98 = vmatmul.f32.gmra.mxu0 %v76
      %v99 = vpop.f32.mrf.mxu0
      %v100 = vadd.f32 0.0, %v99
      %101 = vdwg.mxu0
      %v102 = vsub.f32 %v74, %v100
      %v104 = vperm.slane %v73, 0
      %v106 = vadd.f32 %v102, %v104
      %v107 = vmax.f32 %v106, 0.0
      %v108 = vld [vmem:[%s5] sm:$0xff]
      %v109 = vld [vmem:[%s5 + $0x8] sm:$0xff]
      %v110 = vld [vmem:[%s5 + $0x10] sm:$0xff]
      %v111 = vld [vmem:[%s5 + $0x18] sm:$0xff]
      %v112 = vld [vmem:[%s5 + $0x20] sm:$0xff]
      %v113 = vld [vmem:[%s5 + $0x28] sm:$0xff]
      %v114 = vld [vmem:[%s5 + $0x30] sm:$0xff]
      %v115 = vld [vmem:[%s5 + $0x38] sm:$0xff]
      %v116 = vld [vmem:[%s5 + $0x40] sm:$0xff]
      %v117 = vld [vmem:[%s5 + $0x48] sm:$0xff]
      %v118 = vld [vmem:[%s5 + $0x50] sm:$0xff]
      %v119 = vld [vmem:[%s5 + $0x58] sm:$0xff]
      %v120 = vld [vmem:[%s5 + $0x60] sm:$0xff]
      %v121 = vld [vmem:[%s5 + $0x68] sm:$0xff]
      %v122 = vld [vmem:[%s5 + $0x70] sm:$0xff]
      %v123 = vld [vmem:[%s5 + $0x78] sm:$0xff]
      %124 = vmatpush.msra.mxu0 %v123
      %125 = vmatpush.msra.mxu0 %v122
      %126 = vmatpush.msra.mxu0 %v121
      %127 = vmatpush.msra.mxu0 %v120
      %128 = vmatpush.msra.mxu0 %v119
      %129 = vmatpush.msra.mxu0 %v118
      %130 = vmatpush.msra.mxu0 %v117
      %131 = vmatpush.msra.mxu0 %v116
      %132 = vmatpush.msra.mxu0 %v115
      %133 = vmatpush.msra.mxu0 %v114
      %134 = vmatpush.msra.mxu0 %v113
      %135 = vmatpush.msra.mxu0 %v112
      %136 = vmatpush.msra.mxu0 %v111
      %137 = vmatpush.msra.mxu0 %v110
      %138 = vmatpush.msra.mxu0 %v109
      %139 = vmatpush.msra.mxu0 %v108
      %140 = vmatmul.f32.gmra.mxu0 %v107
      %v141 = vpop.f32.mrf.mxu0
      %v142 = vadd.f32 0.0, %v141
      %143 = vdwg.mxu0
      %v144 = vsel %vm37, %v142, -inf
      %145 = vmax.xlane.f32.xlu0 %v144
      %v146 = vpop.xlane.xlu0 %145
      %v147 = vsub.f32 %v142, %v146
      %v148 = vmul.f32 %v147, 1.442695
      %v149 = vpow.pop %v148
      %v150 = vld [vmem:[%s6] sm:$0xf]
      %v152 = vsel %vm37, %v149, 0
      %v155 = vsel %vm78, %v150, 0
      %157 = vmatpush.msra.mxu0 0.0
      %158 = vmatpush.msra.mxu0 0.0
      %159 = vmatpush.msra.mxu0 0.0
      %160 = vmatpush.msra.mxu0 0.0
      %161 = vmatpush.msra.mxu0 0.0
      %162 = vmatpush.msra.mxu0 0.0
      %163 = vmatpush.msra.mxu0 0.0
      %164 = vmatpush.msra.mxu0 0.0
      %165 = vmatpush.msra.mxu0 0.0
      %166 = vmatpush.msra.mxu0 0.0
      %167 = vmatpush.msra.mxu0 0.0
      %168 = vmatpush.msra.mxu0 0.0
      %169 = vmatpush.msra.mxu0 0.0
      %170 = vmatpush.msra.mxu0 0.0
      %171 = vmatpush.msra.mxu0 0.0
      %172 = vmatpush.msra.mxu0 %v155
      %173 = vmatmul.f32.gmra.mxu0 %v152
      %v174 = vpop.f32.mrf.mxu0
      %v175 = vadd.f32 0.0, %v174
      %176 = vdwg.mxu0
      %s177 = smul.u32 %s49, 8
      %s178 = scalar_lea.vmem %s2, %s177
      %v179 = vld [vmem:[%s178] sm:$0xff]
      %181 = vrot.lane.b32.xlu0 %v175, 125
      %v182 = vpop.permute.xlu0 %181
      %v184 = vmul.f32 %v179, %v182
      %186 = vset.pattern.permute.xlu0 0
      %187 = vperm.xlu0 %186, %v184
      %v188 = vpop.permute.xlu0 %187
      %vm190 = vcmp.ge.f32.partialorder %v188, %v175
      %v191 = vsel %vm190, 1, 0
      %v192 = vsel %vm37, %v191, 0
      %v193 = vand.u32 %v192, 65535
      %v194 = vshrl.u32 %v192, 16
      %v195 = vcvt.s32.f32 %v193
      %v196 = vcvt.s32.f32 %v194
      %197 = vadd.xlane.f32.xlu0 %v195
      %v198 = vpop.xlane.xlu0 %197
      %199 = vadd.xlane.f32.xlu0 %v196
      %v200 = vpop.xlane.xlu0 %199
      %v201 = vcvt.f32.s32 %v198
      %v202 = vcvt.f32.s32 %v200
      %v203 = vshll.u32 %v202, 16
      %v204 = vadd.s32 %v203, %v201
      %vm205 = vcmp.lt.s32.totalorder %v204, 3
      %v206 = vsel %vm205, %v204, 3
      %vm207 = vcmp.eq.s32.totalorder %v47, %v206
      %v208 = vsel %vm207, 1, 0
      %v209 = vcvt.s32.f32 %v208
      %v211 = vsel %vm37, %v209, 0
      %213 = vmatpush.msra.mxu0 0.0
      %214 = vmatpush.msra.mxu0 0.0
      %215 = vmatpush.msra.mxu0 0.0
      %216 = vmatpush.msra.mxu0 0.0
      %217 = vmatpush.msra.mxu0 0.0
      %218 = vmatpush.msra.mxu0 0.0
      %219 = vmatpush.msra.mxu0 0.0
      %220 = vmatpush.msra.mxu0 0.0
      %221 = vmatpush.msra.mxu0 0.0
      %222 = vmatpush.msra.mxu0 0.0
      %223 = vmatpush.msra.mxu0 0.0
      %224 = vmatpush.msra.mxu0 0.0
      %225 = vmatpush.msra.mxu0 0.0
      %226 = vmatpush.msra.mxu0 0.0
      %227 = vmatpush.msra.mxu0 0.0
      %228 = vmatpush.msra.mxu0 %v80
      %229 = vmatmul.f32.gmra.mxu0 %v211
      %v230 = vpop.f32.mrf.mxu0
      %v231 = vadd.f32 0.0, %v230
      %232 = vdwg.mxu0
      %v233 = vadd.f32 %v102, %v231
      %234 = vst [vmem:[#allocation2] sm:$0xff] %v233
      %235 = vst.msk [vmem:[%s67] sm:$0xff] %vm37, %v209
    $region34: #{gibbs_sweep.1} parent=1 // loop_footer
      %s53 = sadd.s32 1, %s49
    $region35: #{gibbs_sweep.1} parent=1 // loop_footer_branch
      %48 = sbr.rel target = $region31
    $region36: #{gibbs_sweep.1} parent=1 // loop_exit
      _
    %v236 = vld [vmem:[#allocation3] sm:$0xff]
    %vm237 = vcmp.gt.f32.partialorder %v236, 0.5
    %v238 = vsel %vm237, %v47, 0
    %v239 = vsel %vm37, %v238, 0
    %v240 = vand.u32 %v239, 65535
    %v241 = vshrl.u32 %v239, 16
    %v242 = vcvt.s32.f32 %v240
    %v243 = vcvt.s32.f32 %v241
    %244 = vadd.xlane.f32.xlu0 %v242
    %v245 = vpop.xlane.xlu0 %244
    %246 = vadd.xlane.f32.xlu0 %v243
    %v247 = vpop.xlane.xlu0 %246
    %v248 = vcvt.f32.s32 %v245
    %v249 = vcvt.f32.s32 %v247
    %v250 = vshll.u32 %v249, 16
    %v251 = vadd.s32 %v250, %v248
    %vm252 = vcmp.eq.s32.totalorder %v47, 0
    %v253 = vsel %vm252, %v251, 0
    %s254 = scalar_lea.vmem [#allocation3], 8
    %v255 = vld [vmem:[%s254] sm:$0xff]
    %vm256 = vcmp.gt.f32.partialorder %v255, 0.5
    %v257 = vsel %vm256, %v47, 0
    %v258 = vsel %vm37, %v257, 0
    %v259 = vand.u32 %v258, 65535
    %v260 = vshrl.u32 %v258, 16
    %v261 = vcvt.s32.f32 %v259
    %v262 = vcvt.s32.f32 %v260
    %263 = vadd.xlane.f32.xlu0 %v261
    %v264 = vpop.xlane.xlu0 %263
    %265 = vadd.xlane.f32.xlu0 %v262
    %v266 = vpop.xlane.xlu0 %265
    %v267 = vcvt.f32.s32 %v264
    %v268 = vcvt.f32.s32 %v266
    %v269 = vshll.u32 %v268, 16
    %v270 = vadd.s32 %v269, %v267
    %vm271 = vcmp.eq.s32.totalorder %v47, 1
    %v272 = vsel %vm271, %v270, %v253
    %s273 = scalar_lea.vmem [#allocation3], 16
    %v274 = vld [vmem:[%s273] sm:$0xff]
    %vm275 = vcmp.gt.f32.partialorder %v274, 0.5
    %v276 = vsel %vm275, %v47, 0
    %v277 = vsel %vm37, %v276, 0
    %v278 = vand.u32 %v277, 65535
    %v279 = vshrl.u32 %v277, 16
    %v280 = vcvt.s32.f32 %v278
    %v281 = vcvt.s32.f32 %v279
    %282 = vadd.xlane.f32.xlu0 %v280
    %v283 = vpop.xlane.xlu0 %282
    %284 = vadd.xlane.f32.xlu0 %v281
    %v285 = vpop.xlane.xlu0 %284
    %v286 = vcvt.f32.s32 %v283
    %v287 = vcvt.f32.s32 %v285
    %v288 = vshll.u32 %v287, 16
    %v289 = vadd.s32 %v288, %v286
    %vm290 = vcmp.eq.s32.totalorder %v47, 2
    %v291 = vsel %vm290, %v289, %v272
    %s292 = scalar_lea.vmem [#allocation3], 24
    %v293 = vld [vmem:[%s292] sm:$0xff]
    %vm294 = vcmp.gt.f32.partialorder %v293, 0.5
    %v295 = vsel %vm294, %v47, 0
    %v296 = vsel %vm37, %v295, 0
    %v297 = vand.u32 %v296, 65535
    %v298 = vshrl.u32 %v296, 16
    %v299 = vcvt.s32.f32 %v297
    %v300 = vcvt.s32.f32 %v298
    %301 = vadd.xlane.f32.xlu0 %v299
    %v302 = vpop.xlane.xlu0 %301
    %303 = vadd.xlane.f32.xlu0 %v300
    %v304 = vpop.xlane.xlu0 %303
    %v305 = vcvt.f32.s32 %v302
    %v306 = vcvt.f32.s32 %v304
    %v307 = vshll.u32 %v306, 16
    %v308 = vadd.s32 %v307, %v305
    %vm309 = vcmp.eq.s32.totalorder %v47, 3
    %v310 = vsel %vm309, %v308, %v291
    %s311 = scalar_lea.vmem [#allocation3], 32
    %v312 = vld [vmem:[%s311] sm:$0xff]
    %vm313 = vcmp.gt.f32.partialorder %v312, 0.5
    %v314 = vsel %vm313, %v47, 0
    %v315 = vsel %vm37, %v314, 0
    %v316 = vand.u32 %v315, 65535
    %v317 = vshrl.u32 %v315, 16
    %v318 = vcvt.s32.f32 %v316
    %v319 = vcvt.s32.f32 %v317
    %320 = vadd.xlane.f32.xlu0 %v318
    %v321 = vpop.xlane.xlu0 %320
    %322 = vadd.xlane.f32.xlu0 %v319
    %v323 = vpop.xlane.xlu0 %322
    %v324 = vcvt.f32.s32 %v321
    %v325 = vcvt.f32.s32 %v323
    %v326 = vshll.u32 %v325, 16
    %v327 = vadd.s32 %v326, %v324
    %vm328 = vcmp.eq.s32.totalorder %v47, 4
    %v329 = vsel %vm328, %v327, %v310
    %s330 = scalar_lea.vmem [#allocation3], 40
    %v331 = vld [vmem:[%s330] sm:$0xff]
    %vm332 = vcmp.gt.f32.partialorder %v331, 0.5
    %v333 = vsel %vm332, %v47, 0
    %v334 = vsel %vm37, %v333, 0
    %v335 = vand.u32 %v334, 65535
    %v336 = vshrl.u32 %v334, 16
    %v337 = vcvt.s32.f32 %v335
    %v338 = vcvt.s32.f32 %v336
    %339 = vadd.xlane.f32.xlu0 %v337
    %v340 = vpop.xlane.xlu0 %339
    %341 = vadd.xlane.f32.xlu0 %v338
    %v342 = vpop.xlane.xlu0 %341
    %v343 = vcvt.f32.s32 %v340
    %v344 = vcvt.f32.s32 %v342
    %v345 = vshll.u32 %v344, 16
    %v346 = vadd.s32 %v345, %v343
    %vm347 = vcmp.eq.s32.totalorder %v47, 5
    %v348 = vsel %vm347, %v346, %v329
    %s349 = scalar_lea.vmem [#allocation3], 48
    %v350 = vld [vmem:[%s349] sm:$0xff]
    %vm351 = vcmp.gt.f32.partialorder %v350, 0.5
    %v352 = vsel %vm351, %v47, 0
    %v353 = vsel %vm37, %v352, 0
    %v354 = vand.u32 %v353, 65535
    %v355 = vshrl.u32 %v353, 16
    %v356 = vcvt.s32.f32 %v354
    %v357 = vcvt.s32.f32 %v355
    %358 = vadd.xlane.f32.xlu0 %v356
    %v359 = vpop.xlane.xlu0 %358
    %360 = vadd.xlane.f32.xlu0 %v357
    %v361 = vpop.xlane.xlu0 %360
    %v362 = vcvt.f32.s32 %v359
    %v363 = vcvt.f32.s32 %v361
    %v364 = vshll.u32 %v363, 16
    %v365 = vadd.s32 %v364, %v362
    %vm366 = vcmp.eq.s32.totalorder %v47, 6
    %v367 = vsel %vm366, %v365, %v348
    %s368 = scalar_lea.vmem [#allocation3], 56
    %v369 = vld [vmem:[%s368] sm:$0xff]
    %vm370 = vcmp.gt.f32.partialorder %v369, 0.5
    %v371 = vsel %vm370, %v47, 0
    %v372 = vsel %vm37, %v371, 0
    %v373 = vand.u32 %v372, 65535
    %v374 = vshrl.u32 %v372, 16
    %v375 = vcvt.s32.f32 %v373
    %v376 = vcvt.s32.f32 %v374
    %377 = vadd.xlane.f32.xlu0 %v375
    %v378 = vpop.xlane.xlu0 %377
    %379 = vadd.xlane.f32.xlu0 %v376
    %v380 = vpop.xlane.xlu0 %379
    %v381 = vcvt.f32.s32 %v378
    %v382 = vcvt.f32.s32 %v380
    %v383 = vshll.u32 %v382, 16
    %v384 = vadd.s32 %v383, %v381
    %vm385 = vcmp.eq.s32.totalorder %v47, 7
    %v386 = vsel %vm385, %v384, %v367
    %vm387 = vcmask 64512
    %388 = vst.msk [vmem:[#allocation4] sm:$0xff] %vm387, %v386
    // Predicated region
    $region37: #{gibbs_sweep.1} parent=1 // pred_check
      _
    $region38: #{gibbs_sweep.1} parent=1 // pred_check_branch
      %390 = sbr.rel (0) target = $region40
    $region39: #{gibbs_sweep.1} parent=1 // pred_region
      %392 = vsyncadd [#allocation5], 0
      %s394 = sshll.u32 [#allocation4], 4
      %s395 = int_to_ptr.vmem [resolvable:$true] %s394
      %s396 = sshll.u32 %s7, 4
      %s397 = int_to_ptr.hbm [resolvable:$true] %s396
      %399 = dma.vmem_to_hbm [thread:$0]  %s395, 128, %s397, [#allocation5]
    $region40: #{gibbs_sweep.1} parent=1 // pred_fallthru
      _
    // Predicated region
    $region41: #{gibbs_sweep.1} parent=1 // pred_check
      _
    $region42: #{gibbs_sweep.1} parent=1 // pred_check_branch
      %401 = sbr.rel (0) target = $region44
    $region43: #{gibbs_sweep.1} parent=1 // pred_region
      %403 = dma.done [#allocation5], 128
    $region44: #{gibbs_sweep.1} parent=1 // pred_fallthru
      _
    %404 = vsyncpa [#allocation5], 1

</llo_original>
